<compile_context>
chip_gen: v7x
topology: tpu7x:2x2x1
jax: 0.10.0
libtpu: 0.0.40
codegen_flags: <defaults>
</compile_context>

<pallas_src>
import functools

import jax
import jax.numpy as jnp
from jax.experimental import pallas as pl
from jax.experimental.pallas import tpu as pltpu

DIM = 64     # the module hardcodes self.dim = 64 regardless of the ctor arg
LANES = 128  # TPU lane width


def _dense_gating_kernel(x_ref, w_ref, o_ref, *, pack):
    # x_ref: (tile_n, DIM)   w_ref: (DIM, num_moe)
    # o_ref: (tile_n // pack, pack * num_moe) if pack > 1 else (tile_n, num_moe)
    logits = jnp.dot(x_ref[...], w_ref[...], preferred_element_type=jnp.float32)
    m = jnp.max(logits, axis=-1, keepdims=True)
    e = jnp.exp(logits - m)
    probs = e * pl.reciprocal(jnp.sum(e, axis=-1, keepdims=True), approx=False)
    if pack > 1:
        tn, nm = probs.shape
        # Pack `pack` tokens per 128-lane row -> unmasked, lane-dense stores.
        probs = probs.reshape(tn // pack, pack * nm)
    o_ref[...] = probs.astype(o_ref.dtype)


def _round_up(v, m):
    return ((v + m - 1) // m) * m


def dense_gating(x, weight, *, tile_n=4096):
    """probs = softmax(x @ weight.T, axis=-1).

    x: (..., 64) float; weight: (num_moe, 64) (PyTorch nn.Linear layout).
    tile_n: rows of x per grid step. 4096 amortizes per-step overhead on all
    generations; v7x can pass 8192, v5e should stay <= 4096.
    """
    num_moe = weight.shape[0]
    orig_shape = x.shape
    assert orig_shape[-1] == DIM, f"last dim must be {DIM}"
    x2 = x.reshape(-1, DIM)
    n = x2.shape[0]

    # Lane-dense output packing factor (tokens per 128-lane output row).
    pack = LANES // num_moe if (num_moe <= LANES and LANES % num_moe == 0) else 1
    if pack > 1 and n < pack * 8:
        pack = 1  # tiny problem: keep the plain (block == whole array) path

    if pack > 1:
        align = pack * 8  # packed out-block rows must be a multiple of 8
        tile_n = max(align, min(_round_up(tile_n, align), _round_up(n, align)))
        out_rows = _round_up(n, pack) // pack
        out_shape = jax.ShapeDtypeStruct((out_rows, LANES), x.dtype)
        out_spec = pl.BlockSpec((tile_n // pack, LANES), lambda i: (i, 0))
    else:
        tile_n = max(8, min(tile_n, _round_up(n, 8)))
        out_shape = jax.ShapeDtypeStruct((n, num_moe), x.dtype)
        out_spec = pl.BlockSpec((tile_n, num_moe), lambda i: (i, 0))

    w_t = weight.T  # (DIM, num_moe), stays resident across all grid steps
    grid = (pl.cdiv(n, tile_n),)  # ragged last block handled by Pallas (no pad/slice)

    itemsize = jnp.dtype(x.dtype).itemsize
    # Double-buffered VMEM footprint with lane padding (x: 64 -> 128 lanes).
    needed = (2 * tile_n * LANES * itemsize                 # x buffers
              + 2 * (tile_n // pack) * LANES * itemsize     # out buffers
              + 2 * _round_up(DIM, 8) * LANES * 4)          # resident weight
    vmem_limit = min(64 << 20, max(32 << 20, needed + (8 << 20)))

    cost = pl.CostEstimate(
        flops=2 * n * DIM * num_moe,
        transcendentals=n * num_moe,
        bytes_accessed=n * DIM * itemsize + n * num_moe * itemsize + DIM * num_moe * 4,
    )

    out = pl.pallas_call(
        functools.partial(_dense_gating_kernel, pack=pack),
        out_shape=out_shape,
        grid_spec=pltpu.PrefetchScalarGridSpec(
            num_scalar_prefetch=0,
            grid=grid,
            in_specs=[
                pl.BlockSpec((tile_n, DIM), lambda i: (i, 0)),
                pl.BlockSpec((DIM, num_moe), lambda i: (0, 0)),
            ],
            out_specs=out_spec,
        ),
        compiler_params=pltpu.CompilerParams(
            dimension_semantics=("parallel",),
            vmem_limit_bytes=vmem_limit,
        ),
        cost_estimate=cost,
    )(x2, w_t)

    if pack > 1:
        # Free row-major view back to (n_pad, num_moe), then drop garbage tail.
        out = out.reshape(-1, num_moe)[:n]
    return out.reshape(*orig_shape[:-1], num_moe)


def reference(x, weight):
    logits = jnp.einsum("...d,md->...m", x, weight)
    return jax.nn.softmax(logits, axis=-1)


if __name__ == "__main__":
    num_moe = 8

    key = jax.random.PRNGKey(0)
    kx, kw, kx2, kx3 = jax.random.split(key, 4)

    # deterministic nn.Linear-style init: U(-1/sqrt(DIM), 1/sqrt(DIM)), (num_moe, DIM)
    bound = 1.0 / (DIM ** 0.5)
    weight = jax.random.uniform(kw, (num_moe, DIM), dtype=jnp.float32,
                                minval=-bound, maxval=bound)

    # Test 1: small (batch=2, seq=8) -> n=16, plain single-tile path.
    batch, seq = 2, 8
    x = jax.random.normal(kx, (batch, seq, DIM), dtype=jnp.float32)
    probs = jax.block_until_ready(dense_gating(x, weight))
    ref = reference(x, weight)
    assert probs.shape == (batch, seq, num_moe), probs.shape
    assert jnp.allclose(probs, ref, atol=1e-5, rtol=1e-5), "mismatch vs reference"
    assert jnp.allclose(jnp.sum(probs, axis=-1), 1.0, atol=1e-5), "rows must sum to 1"

    # Test 2: lane-dense packed path with a ragged last block:
    # n=600 rows, tile_n=256 -> grid=3, last block partial, tail sliced in wrapper.
    x_r = jax.random.normal(kx2, (3, 200, DIM), dtype=jnp.float32)
    probs_r = jax.block_until_ready(dense_gating(x_r, weight, tile_n=256))
    ref_r = reference(x_r, weight)
    assert probs_r.shape == (3, 200, num_moe), probs_r.shape
    assert jnp.allclose(probs_r, ref_r, atol=1e-5, rtol=1e-5), "ragged/packed mismatch"
    assert jnp.allclose(jnp.sum(probs_r, axis=-1), 1.0, atol=1e-5), "ragged rows must sum to 1"

    # Test 3: default 4096-row tile, multi-step ragged grid (n=5000).
    x_b = jax.random.normal(kx3, (5000, DIM), dtype=jnp.float32)
    probs_b = jax.block_until_ready(dense_gating(x_b, weight))
    ref_b = reference(x_b, weight)
    assert probs_b.shape == (5000, num_moe), probs_b.shape
    assert jnp.allclose(probs_b, ref_b, atol=1e-5, rtol=1e-5), "large mismatch vs reference"
    assert jnp.allclose(jnp.sum(probs_b, axis=-1), 1.0, atol=1e-5), "large rows must sum to 1"

    print("KERNEL_OK")
</pallas_src>

<mosaic_0001>
module attributes {stable_mosaic.version = 11 : i64} {
  func.func @_dense_gating_kernel(%arg0: i32, %arg1: memref<16x64xf32, #tpu.memory_space<vmem>>, %arg2: memref<64x8xf32, #tpu.memory_space<vmem>>, %arg3: memref<16x8xf32, #tpu.memory_space<vmem>>) attributes {dimension_semantics = [#tpu.dimension_semantics<parallel>], iteration_bounds = array<i64: 1>, scalar_prefetch = 0 : i64, scratch_operands = 0 : i64, tpu.core_type = #tpu.core_type<tc>, window_params = [{transform_indices = @transform_0, window_bounds = array<i64: 16, 64>}, {pipeline_mode = #tpu.pipeline_mode<synchronous>, transform_indices = @transform_1, window_bounds = array<i64: 64, 8>}, {transform_indices = @transform_2, window_bounds = array<i64: 16, 8>}]} {
    %c0 = arith.constant 0 : index
    %c0_0 = arith.constant 0 : index
    %0 = vector.load %arg1[%c0, %c0_0] : memref<16x64xf32, #tpu.memory_space<vmem>>, vector<16x64xf32>
    %c0_1 = arith.constant 0 : index
    %c0_2 = arith.constant 0 : index
    %1 = vector.load %arg2[%c0_1, %c0_2] : memref<64x8xf32, #tpu.memory_space<vmem>>, vector<64x8xf32>
    %cst = arith.constant dense<0.000000e+00> : vector<16x8xf32>
    %2 = tpu.matmul %0, %1, %cst {dimension_numbers = #tpu.dot_dimension_numbers<[1], [0], [0], [1], [0, 0, 1, 1], [], []>} : vector<16x64xf32>, vector<64x8xf32>, vector<16x8xf32> -> vector<16x8xf32>
    %cst_3 = arith.constant dense<0xFF800000> : vector<16xf32>
    %3 = vector.multi_reduction <maximumf>, %2, %cst_3 [1] : vector<16x8xf32> to vector<16xf32>
    %4 = vector.shape_cast %3 : vector<16xf32> to vector<16x1xf32>
    %5 = vector.broadcast %4 : vector<16x1xf32> to vector<16x8xf32>
    %6 = arith.subf %2, %5 : vector<16x8xf32>
    %7 = math.exp %6 : vector<16x8xf32>
    %cst_4 = arith.constant dense<0.000000e+00> : vector<16xf32>
    %8 = vector.multi_reduction <add>, %7, %cst_4 [1] : vector<16x8xf32> to vector<16xf32>
    %9 = vector.shape_cast %8 : vector<16xf32> to vector<16x1xf32>
    %10 = tpu.reciprocal %9 : vector<16x1xf32> -> vector<16x1xf32>
    %11 = vector.broadcast %10 : vector<16x1xf32> to vector<16x8xf32>
    %12 = arith.mulf %7, %11 : vector<16x8xf32>
    %c0_5 = arith.constant 0 : index
    %c0_6 = arith.constant 0 : index
    %13 = vector.load %arg3[%c0_5, %c0_6] : memref<16x8xf32, #tpu.memory_space<vmem>>, vector<16x8xf32>
    tpu.vector_store %arg3[%c0_5, %c0_6], %12 {strides = array<i32>} : memref<16x8xf32, #tpu.memory_space<vmem>>, vector<16x8xf32>,
    return
  }
  func.func @transform_0(%arg0: i32) -> (i32, i32) {
    %c0_i32 = arith.constant 0 : i32
    %c0_i32_0 = arith.constant 0 : i32
    return %arg0, %c0_i32 : i32, i32
  }
  func.func @transform_1(%arg0: i32) -> (i32, i32) {
    %c0_i32 = arith.constant 0 : i32
    %c0_i32_0 = arith.constant 0 : i32
    %c0_i32_1 = arith.constant 0 : i32
    return %c0_i32, %c0_i32_0 : i32, i32
  }
  func.func @transform_2(%arg0: i32) -> (i32, i32) {
    %c0_i32 = arith.constant 0 : i32
    %c0_i32_0 = arith.constant 0 : i32
    return %arg0, %c0_i32 : i32, i32
  }
}

</mosaic_0001>

<llo_original>
// kernel: tpu_custom_call.1
$region0: #{tpu_custom_call.1}
  #allocation0 [shape = 'u32[]', space=smem, size = 0x4, offset = 0x4, fixed_abs, tag = 'smem constant byte address 0x4 - core index']
  #allocation1 [shape = 'u32[144,128]{1,0:T(1,128)}', space=vmem, size = 0x12000, scoped, tag = 'internal scratch']
  %s0 = inlined_call_operand.vmem [shape: f32[16,64], index: 0, kind: input, shape index: {}]
  %s1 = inlined_call_operand.vmem [shape: f32[64,8], index: 1, kind: input, shape index: {}]
  %s2 = inlined_call_operand.vmem [shape: f32[16,8], index: 2, kind: output, shape index: {}]
  %s3 = sld [smem:[#allocation0]]
  $region18: #{tpu_custom_call.1} parent=0
    _
  %s5 = ssub.s32 1, %s3
  %s6 = scalar_select 0, %s5, %s3
  // Predicated region
  $region2: #{tpu_custom_call.1} parent=0 // pred_check
    _
  $region3: #{tpu_custom_call.1} parent=0 // pred_check_branch
    %8 = sbr.rel (0) target = $region5
  $region4: #{tpu_custom_call.1} parent=0 // pred_region
    _
  $region5: #{tpu_custom_call.1} parent=0 // pred_fallthru
    _
  // Predicated region
  $region6: #{tpu_custom_call.1} parent=0 // pred_check
    _
  $region7: #{tpu_custom_call.1} parent=0 // pred_check_branch
    %10 = sbr.rel (0) target = $region9
  $region8: #{tpu_custom_call.1} parent=0 // pred_region
    _
  $region9: #{tpu_custom_call.1} parent=0 // pred_fallthru
    _
  %v11 = vld [vmem:[%s0] sm:$0xff]
  %v12 = vld [vmem:[%s0 + $0x8] sm:$0xff]
  %v13 = vld [vmem:[%s1] sm:$0xff]
  %v14 = vld [vmem:[%s1 + $0x8] sm:$0xff]
  %v15 = vld [vmem:[%s1 + $0x10] sm:$0xff]
  %v16 = vld [vmem:[%s1 + $0x18] sm:$0xff]
  %v17 = vld [vmem:[%s1 + $0x20] sm:$0xff]
  %v18 = vld [vmem:[%s1 + $0x28] sm:$0xff]
  %v19 = vld [vmem:[%s1 + $0x30] sm:$0xff]
  %v20 = vld [vmem:[%s1 + $0x38] sm:$0xff]
  %vm21 = vcmask 523264
  %v23 = vsel %vm21, %v11, 0
  %v26 = vsel %vm21, %v12, 0
  %28 = vmatprep.subr.mxu0 0.0
  %29 = vmatpush1.msra.mxu0 %v13
  %30 = vmatprep.subr.mxu0 0.0
  %31 = vmatpush1.msra.mxu0 %v14
  %32 = vmatprep.subr.mxu0 0.0
  %33 = vmatpush1.msra.mxu0 %v15
  %34 = vmatprep.subr.mxu0 0.0
  %35 = vmatpush1.msra.mxu0 %v16
  %36 = vmatprep.subr.mxu0 0.0
  %37 = vmatpush1.msra.mxu0 %v17
  %38 = vmatprep.subr.mxu0 0.0
  %39 = vmatpush1.msra.mxu0 %v18
  %40 = vmatprep.subr.mxu0 0.0
  %41 = vmatpush1.msra.mxu0 %v19
  %42 = vmatprep.subr.mxu0 0.0
  %43 = vmatpush1.msra.mxu0 %v20
  %44 = vmatprep.subr.mxu0 0.0
  %45 = vmatpush1.msra.mxu0 0.0
  %46 = vmatprep.subr.mxu0 0.0
  %47 = vmatpush1.msra.mxu0 0.0
  %48 = vmatprep.subr.mxu0 0.0
  %49 = vmatpush1.msra.mxu0 0.0
  %50 = vmatprep.subr.mxu0 0.0
  %51 = vmatpush1.msra.mxu0 0.0
  %52 = vmatprep.subr.mxu0 0.0
  %53 = vmatpush1.msra.mxu0 0.0
  %54 = vmatprep.subr.mxu0 0.0
  %55 = vmatpush1.msra.mxu0 0.0
  %56 = vmatprep.subr.mxu0 0.0
  %57 = vmatpush1.msra.mxu0 0.0
  %58 = vmatprep.subr.mxu0 0.0
  %59 = vmatpush1.msra.mxu0 0.0
  %60 = vmatprep.subr.mxu0 0.0
  %61 = vmatpush1.msra.mxu0 0.0
  %62 = vmatprep.subr.mxu0 0.0
  %63 = vmatpush1.msra.mxu0 0.0
  %64 = vmatprep.subr.mxu0 0.0
  %65 = vmatpush1.msra.mxu0 0.0
  %66 = vmatprep.subr.mxu0 0.0
  %67 = vmatpush1.msra.mxu0 0.0
  %68 = vmatprep.subr.mxu0 0.0
  %69 = vmatpush1.msra.mxu0 0.0
  %70 = vmatprep.subr.mxu0 0.0
  %71 = vmatpush1.msra.mxu0 0.0
  %72 = vmatprep.subr.mxu0 0.0
  %73 = vmatpush1.msra.mxu0 0.0
  %74 = vmatprep.subr.mxu0 0.0
  %75 = vmatpush1.msra.mxu0 0.0
  %76 = vmatprep.subr.mxu0 0.0
  %77 = vmatpush1.msra.mxu0 0.0
  %78 = vmatprep.subr.mxu0 0.0
  %79 = vmatpush1.msra.mxu0 0.0
  %80 = vmatprep.subr.mxu0 0.0
  %81 = vmatpush1.msra.mxu0 0.0
  %82 = vmatprep.subr.mxu0 0.0
  %83 = vmatpush1.msra.mxu0 0.0
  %84 = vmatprep.subr.mxu0 0.0
  %85 = vmatpush1.msra.mxu0 0.0
  %86 = vmatprep.subr.mxu0 0.0
  %87 = vmatpush1.msra.mxu0 0.0
  %88 = vmatprep.subr.mxu0 0.0
  %89 = vmatpush1.msra.mxu0 0.0
  %90 = vmatprep.subr.mxu0 0.0
  %91 = vmatpush1.msra.mxu0 0.0
  %92 = vmatprep.mubr.f32.mxu0 0.0
  %93 = vmatmul.mubr.f32.gmra.mrb[0].mxu0 %v23
  %v94 = vpop.f32.mrb[0].mxu0
  %v95 = vadd.f32 0.0, %v94
  %v96 = vpop.f32.mrb[0].mxu0
  %97 = vmatprep.mubr.f32.mxu0 0.0
  %98 = vmatmul.mubr.f32.gmra.mrb[0].mxu0 %v26
  %v99 = vpop.f32.mrb[0].mxu0
  %v100 = vadd.f32 0.0, %v99
  %v101 = vpop.f32.mrb[0].mxu0
  %102 = vdwg.mxu0
  %vm103 = vcmask 64512
  %v104 = vsel %vm103, %v95, -inf
  %105 = vmax.xlane.f32.xlu0 %v104
  %v106 = vpop.xlane.xlu0 %105
  %v107 = vsel %vm103, %v100, -inf
  %108 = vmax.xlane.f32.xlu0 %v107
  %v109 = vpop.xlane.xlu0 %108
  %v110 = vsub.f32 %v95, %v106
  %v111 = vsub.f32 %v100, %v109
  %v112 = vmul.f32 %v110, 1.442695
  %v113 = vpow.pop %v112
  %v114 = vmul.f32 %v111, 1.442695
  %v115 = vpow.pop %v114
  %v116 = vsel %vm103, %v113, 0.0
  %117 = vadd.xlane.f32.xlu0 %v116
  %v118 = vpop.xlane.xlu0 %117
  %v119 = vsel %vm103, %v115, 0.0
  %120 = vadd.xlane.f32.xlu0 %v119
  %v121 = vpop.xlane.xlu0 %120
  %v122 = vrcp.pop %v118
  %v123 = vrcp.pop %v121
  %v124 = vmul.f32 %v113, %v122
  %v125 = vmul.f32 %v115, %v123
  %126 = vst.msk [vmem:[%s2] sm:$0xff] %vm103, %v124
  %127 = vst.msk [vmem:[%s2 + $0x8] sm:$0xff] %vm103, %v125
  // Predicated region
  $region10: #{tpu_custom_call.1} parent=0 // pred_check
    _
  $region11: #{tpu_custom_call.1} parent=0 // pred_check_branch
    %129 = sbr.rel (0) target = $region13
  $region12: #{tpu_custom_call.1} parent=0 // pred_region
    _
  $region13: #{tpu_custom_call.1} parent=0 // pred_fallthru
    _
  // Predicated region
  $region14: #{tpu_custom_call.1} parent=0 // pred_check
    _
  $region15: #{tpu_custom_call.1} parent=0 // pred_check_branch
    %131 = sbr.rel (0) target = $region17
  $region16: #{tpu_custom_call.1} parent=0 // pred_region
    _
  $region17: #{tpu_custom_call.1} parent=0 // pred_fallthru
    _

</llo_original>
